<compile_context>
chip_gen: v6e
topology: v6e:2x2x1
jax: 0.10.0
libtpu: 0.0.40
codegen_flags: <defaults>
</compile_context>

<pallas_src>
import functools

import jax
import jax.numpy as jnp
from jax.experimental import pallas as pl
from jax.experimental.pallas import tpu as pltpu


# ----------------------------------------------------------------------------
# Small helpers
# ----------------------------------------------------------------------------
def _round_up(x: int, m: int) -> int:
    return ((x + m - 1) // m) * m


def _pad2d(a, rows: int, cols: int):
    return jnp.pad(a, ((0, rows - a.shape[0]), (0, cols - a.shape[1])))


def _pick_tile(d: int, candidates) -> int:
    for c in candidates:
        if d % c == 0:
            return c
    return d  # d is always a multiple of 128 here


# ----------------------------------------------------------------------------
# Kernel 1: whole-MLP fused kernel (grid over row tiles only)
# ----------------------------------------------------------------------------
def _fused_mlp_kernel(x_ref, *refs, relu_flags, compute_dtype):
    """refs = (w0, b0, w1, b1, ..., o_ref). Weights are (D_in_pad, D_out_pad)."""
    o_ref = refs[-1]
    h = x_ref[...].astype(compute_dtype)              # (TM, D0_pad)
    y = None
    n_layers = len(relu_flags)
    for l in range(n_layers):
        w = refs[2 * l][...]                          # (Din_pad, Dout_pad)
        b = refs[2 * l + 1][...]                      # (1, Dout_pad) f32
        y = jnp.dot(h, w, preferred_element_type=jnp.float32) + b
        if relu_flags[l]:
            y = jnp.maximum(y, 0.0)
        if l + 1 < n_layers:
            h = y.astype(compute_dtype)               # stays in VMEM / vregs
    o_ref[...] = y.astype(o_ref.dtype)


def _mlp_forward_fused(params, x, *, compute_dtype):
    N, D0 = x.shape
    tm = min(128, _round_up(N, 8))
    n_pad = _round_up(N, tm)
    d0_pad = params[0]["w"].shape[0]
    x_pad = _pad2d(x, n_pad, d0_pad)

    in_specs = [pl.BlockSpec((tm, d0_pad), lambda i: (i, 0))]
    args = [x_pad]
    for p in params:
        din_p, dout_p = p["w"].shape
        in_specs.append(pl.BlockSpec((din_p, dout_p), lambda i: (0, 0)))
        in_specs.append(pl.BlockSpec((1, dout_p), lambda i: (0, 0)))
        args.extend([p["w"], p["b"]])
    d_last_pad = params[-1]["w"].shape[1]
    relu_flags = tuple(bool(p["apply_relu"]) for p in params)

    out = pl.pallas_call(
        functools.partial(_fused_mlp_kernel, relu_flags=relu_flags,
                          compute_dtype=compute_dtype),
        out_shape=jax.ShapeDtypeStruct((n_pad, d_last_pad), x.dtype),
        grid=(n_pad // tm,),
        in_specs=in_specs,
        out_specs=pl.BlockSpec((tm, d_last_pad), lambda i: (i, 0)),
        compiler_params=pltpu.CompilerParams(
            dimension_semantics=("parallel",)),
    )(*args)
    return out[:N, :params[-1]["d_out"]]


# ----------------------------------------------------------------------------
# Kernel 2: per-layer (M, N, K)-tiled Linear (+ ReLU) with f32 accumulator
# ----------------------------------------------------------------------------
def _linear_tiled_kernel(x_ref, w_ref, b_ref, o_ref, acc_ref, *, apply_relu):
    @pl.when(pl.program_id(2) == 0)
    def _():
        acc_ref[...] = jnp.zeros_like(acc_ref)

    acc_ref[...] += jnp.dot(x_ref[...], w_ref[...],
                            preferred_element_type=jnp.float32)

    @pl.when(pl.program_id(2) == pl.num_programs(2) - 1)
    def _():
        y = acc_ref[...] + b_ref[...]          # bias only in the finalize step
        if apply_relu:
            y = jnp.maximum(y, 0.0)
        o_ref[...] = y.astype(o_ref.dtype)


def _linear_tiled(x, w, b, *, apply_relu, out_dtype, tm, tn, tk):
    m, k = x.shape
    _, n = w.shape
    return pl.pallas_call(
        functools.partial(_linear_tiled_kernel, apply_relu=apply_relu),
        out_shape=jax.ShapeDtypeStruct((m, n), out_dtype),
        grid_spec=pltpu.PrefetchScalarGridSpec(
            num_scalar_prefetch=0,
            grid=(m // tm, n // tn, k // tk),
            in_specs=[
                pl.BlockSpec((tm, tk), lambda i, j, kk: (i, kk)),
                pl.BlockSpec((tk, tn), lambda i, j, kk: (kk, j)),
                pl.BlockSpec((1, tn), lambda i, j, kk: (0, j)),
            ],
            out_specs=pl.BlockSpec((tm, tn), lambda i, j, kk: (i, j)),
            scratch_shapes=[pltpu.VMEM((tm, tn), jnp.float32)],
        ),
        compiler_params=pltpu.CompilerParams(
            dimension_semantics=("parallel", "parallel", "arbitrary")),
    )(x, w, b)


def _mlp_forward_tiled(params, x, *, compute_dtype):
    N = x.shape[0]
    final_dtype = x.dtype
    tm = min(256, _round_up(N, 8))
    m_pad = _round_up(N, tm)
    d0_pad = params[0]["w"].shape[0]
    h = _pad2d(x, m_pad, d0_pad).astype(compute_dtype)
    for li, p in enumerate(params):
        din_p, dout_p = p["w"].shape
        is_last = li == len(params) - 1
        tn = _pick_tile(dout_p, (256, 128))
        tk = _pick_tile(din_p, (512, 256, 128))
        h = _linear_tiled(h, p["w"], p["b"],
                          apply_relu=p["apply_relu"],
                          out_dtype=final_dtype if is_last else compute_dtype,
                          tm=tm, tn=tn, tk=tk)
    return h[:N, :params[-1]["d_out"]]


# ----------------------------------------------------------------------------
# Parameter construction (mirrors MLP.__init__; BN folded, weights transposed)
# ----------------------------------------------------------------------------
def init_mlp_params(key, dims, *, use_bn=False, use_relu=False, use_bias=True,
                    skip_last_layer_relu_bn=True, params_multiplier=1.0,
                    bn_eps=1e-5, compute_dtype=jnp.bfloat16):
    params = []
    last_dim = dims[0]
    n_layers = len(dims) - 1
    for i, dim in enumerate(dims[1:]):
        key, kw, kb = jax.random.split(key, 3)
        bound = 1.0 / float(last_dim) ** 0.5
        w = jax.random.uniform(kw, (dim, last_dim), jnp.float32, -bound, bound)
        w = w * params_multiplier                      # HEAD.PARAMS_MULTIPLIER
        if use_bias:
            b = jax.random.uniform(kb, (dim,), jnp.float32, -bound, bound)
            b = b * params_multiplier
        else:
            b = jnp.zeros((dim,), jnp.float32)

        is_last = i == n_layers - 1
        attach_bn_relu = not (is_last and skip_last_layer_relu_bn)

        if use_bn and attach_bn_relu:
            # Eval-mode BatchNorm1d with default init, folded into Linear.
            gamma = jnp.ones((dim,), jnp.float32)
            beta = jnp.zeros((dim,), jnp.float32)
            running_mean = jnp.zeros((dim,), jnp.float32)
            running_var = jnp.ones((dim,), jnp.float32)
            scale = gamma * jax.lax.rsqrt(running_var + bn_eps)
            shift = beta - running_mean * scale
            w = w * scale[:, None]
            b = b * scale + shift

        apply_relu = bool(use_relu and attach_bn_relu)

        # Pre-transpose to (D_in, D_out) and pad to lane-dense multiples of 128.
        w_t = jnp.asarray(w.T, dtype=compute_dtype)            # (last_dim, dim)
        d_in_pad = _round_up(last_dim, 128)
        d_out_pad = _round_up(dim, 128)
        params.append(dict(
            w=_pad2d(w_t, d_in_pad, d_out_pad),                # bf16, padded
            b=_pad2d(b.reshape(1, dim), 1, d_out_pad),         # f32, padded
            w_logical=w_t,                                     # for reference
            b_logical=b,
            apply_relu=apply_relu,
            d_in=last_dim, d_out=dim))
        last_dim = dim
    return params


# ----------------------------------------------------------------------------
# Forward pass (mirrors MLP.forward)
# ----------------------------------------------------------------------------
_FUSED_WEIGHT_BYTES_BUDGET = 8 * 1024 * 1024   # keep well under v7x scoped VMEM


def mlp_forward(params, batch, *, compute_dtype=jnp.bfloat16, force_tiled=False):
    if isinstance(batch, list):
        assert len(batch) == 1
        batch = batch[0]
    if batch.ndim > 2:
        assert all(d == 1 for d in batch.shape[2:]), \
            f"MLP expected 2D or NxCx1x1 input, got {batch.shape}"
        batch = batch.reshape(batch.shape[0], batch.shape[1])

    weight_bytes = sum(int(p["w"].size) * p["w"].dtype.itemsize +
                       int(p["b"].size) * p["b"].dtype.itemsize for p in params)
    if force_tiled or weight_bytes > _FUSED_WEIGHT_BYTES_BUDGET:
        return _mlp_forward_tiled(params, batch, compute_dtype=compute_dtype)
    return _mlp_forward_fused(params, batch, compute_dtype=compute_dtype)


# Pure-JAX reference mirroring the kernel's bf16-matmul / f32-accumulate math.
def mlp_forward_ref(params, batch, *, compute_dtype=jnp.bfloat16):
    if isinstance(batch, list):
        batch = batch[0]
    if batch.ndim > 2:
        batch = batch.reshape(batch.shape[0], batch.shape[1])
    x = batch
    for p in params:
        y = jnp.dot(x.astype(compute_dtype), p["w_logical"],
                    preferred_element_type=jnp.float32)
        y = y + p["b_logical"]
        if p["apply_relu"]:
            y = jnp.maximum(y, 0.0)
        x = y
    return x.astype(batch.dtype)


if __name__ == "__main__":
    key = jax.random.PRNGKey(0)
    k_in, k_p1, k_in2, k_p2 = jax.random.split(key, 4)
    compute_dtype = jnp.bfloat16

    # --- Config 1 (fused path): Linear -> BN -> ReLU -> Linear, 4D NxCx1x1 in.
    dims = [32, 64, 16]
    params = init_mlp_params(k_p1, dims, use_bn=True, use_relu=True,
                             use_bias=True, skip_last_layer_relu_bn=True,
                             params_multiplier=1.0, bn_eps=1e-5,
                             compute_dtype=compute_dtype)
    x = jax.random.normal(k_in, (2, dims[0], 1, 1), jnp.float32)
    out = jax.block_until_ready(mlp_forward(params, x,
                                            compute_dtype=compute_dtype))
    ref = mlp_forward_ref(params, x, compute_dtype=compute_dtype)
    assert out.shape == (2, dims[-1])
    assert jnp.allclose(out, ref, atol=2e-2, rtol=2e-2), "fused path mismatch"

    # --- Config 2 (tiled path): exercises the (M, N, K) grid + accumulator.
    dims2 = [256, 512, 128]
    params2 = init_mlp_params(k_p2, dims2, use_bn=False, use_relu=True,
                              use_bias=True, skip_last_layer_relu_bn=True,
                              compute_dtype=compute_dtype)
    x2 = jax.random.normal(k_in2, (256, dims2[0]), jnp.float32)
    out2 = jax.block_until_ready(mlp_forward(params2, x2,
                                             compute_dtype=compute_dtype,
                                             force_tiled=True))
    ref2 = mlp_forward_ref(params2, x2, compute_dtype=compute_dtype)
    assert out2.shape == (256, dims2[-1])
    assert jnp.allclose(out2, ref2, atol=2e-2, rtol=2e-2), "tiled path mismatch"

    print("KERNEL_OK")
</pallas_src>

<mosaic_0001>
module attributes {stable_mosaic.version = 11 : i64} {
  func.func @_fused_mlp_kernel(%arg0: i32, %arg1: memref<8x128xf32, #tpu.memory_space<vmem>>, %arg2: memref<128x128xbf16, #tpu.memory_space<vmem>>, %arg3: memref<1x128xf32, #tpu.memory_space<vmem>>, %arg4: memref<128x128xbf16, #tpu.memory_space<vmem>>, %arg5: memref<1x128xf32, #tpu.memory_space<vmem>>, %arg6: memref<8x128xf32, #tpu.memory_space<vmem>>) attributes {dimension_semantics = [#tpu.dimension_semantics<parallel>], iteration_bounds = array<i64: 1>, scalar_prefetch = 0 : i64, scratch_operands = 0 : i64, tpu.core_type = #tpu.core_type<tc>, window_params = [{transform_indices = @transform_0, window_bounds = array<i64: 8, 128>}, {pipeline_mode = #tpu.pipeline_mode<synchronous>, transform_indices = @transform_1, window_bounds = array<i64: 128, 128>}, {pipeline_mode = #tpu.pipeline_mode<synchronous>, transform_indices = @transform_2, window_bounds = array<i64: 1, 128>}, {pipeline_mode = #tpu.pipeline_mode<synchronous>, transform_indices = @transform_3, window_bounds = array<i64: 128, 128>}, {pipeline_mode = #tpu.pipeline_mode<synchronous>, transform_indices = @transform_4, window_bounds = array<i64: 1, 128>}, {transform_indices = @transform_5, window_bounds = array<i64: 8, 128>}]} {
    %c0 = arith.constant 0 : index
    %c0_0 = arith.constant 0 : index
    %0 = vector.load %arg1[%c0, %c0_0] : memref<8x128xf32, #tpu.memory_space<vmem>>, vector<8x128xf32>
    %1 = arith.truncf %0 : vector<8x128xf32> to vector<8x128xbf16>
    %c0_1 = arith.constant 0 : index
    %c0_2 = arith.constant 0 : index
    %2 = vector.load %arg2[%c0_1, %c0_2] : memref<128x128xbf16, #tpu.memory_space<vmem>>, vector<128x128xbf16>
    %c0_3 = arith.constant 0 : index
    %c0_4 = arith.constant 0 : index
    %3 = vector.load %arg3[%c0_3, %c0_4] : memref<1x128xf32, #tpu.memory_space<vmem>>, vector<1x128xf32>
    %cst = arith.constant dense<0.000000e+00> : vector<8x128xf32>
    %4 = tpu.matmul %1, %2, %cst {dimension_numbers = #tpu.dot_dimension_numbers<[1], [0], [0], [1], [0, 0, 1, 1], [], []>} : vector<8x128xbf16>, vector<128x128xbf16>, vector<8x128xf32> -> vector<8x128xf32>
    %5 = vector.broadcast %3 : vector<1x128xf32> to vector<8x128xf32>
    %6 = arith.addf %4, %5 : vector<8x128xf32>
    %cst_5 = arith.constant 0.000000e+00 : f32
    %7 = vector.broadcast %cst_5 : f32 to vector<8x128xf32>
    %8 = arith.maximumf %6, %7 : vector<8x128xf32>
    %9 = arith.truncf %8 : vector<8x128xf32> to vector<8x128xbf16>
    %c0_6 = arith.constant 0 : index
    %c0_7 = arith.constant 0 : index
    %10 = vector.load %arg4[%c0_6, %c0_7] : memref<128x128xbf16, #tpu.memory_space<vmem>>, vector<128x128xbf16>
    %c0_8 = arith.constant 0 : index
    %c0_9 = arith.constant 0 : index
    %11 = vector.load %arg5[%c0_8, %c0_9] : memref<1x128xf32, #tpu.memory_space<vmem>>, vector<1x128xf32>
    %cst_10 = arith.constant dense<0.000000e+00> : vector<8x128xf32>
    %12 = tpu.matmul %9, %10, %cst_10 {dimension_numbers = #tpu.dot_dimension_numbers<[1], [0], [0], [1], [0, 0, 1, 1], [], []>} : vector<8x128xbf16>, vector<128x128xbf16>, vector<8x128xf32> -> vector<8x128xf32>
    %13 = vector.broadcast %11 : vector<1x128xf32> to vector<8x128xf32>
    %14 = arith.addf %12, %13 : vector<8x128xf32>
    %c0_11 = arith.constant 0 : index
    %c0_12 = arith.constant 0 : index
    %15 = vector.load %arg6[%c0_11, %c0_12] : memref<8x128xf32, #tpu.memory_space<vmem>>, vector<8x128xf32>
    tpu.vector_store %arg6[%c0_11, %c0_12], %14 {strides = array<i32>} : memref<8x128xf32, #tpu.memory_space<vmem>>, vector<8x128xf32>,
    return
  }
  func.func @transform_0(%arg0: i32) -> (i32, i32) {
    %c0_i32 = arith.constant 0 : i32
    %c0_i32_0 = arith.constant 0 : i32
    return %arg0, %c0_i32 : i32, i32
  }
  func.func @transform_1(%arg0: i32) -> (i32, i32) {
    %c0_i32 = arith.constant 0 : i32
    %c0_i32_0 = arith.constant 0 : i32
    %c0_i32_1 = arith.constant 0 : i32
    return %c0_i32, %c0_i32_0 : i32, i32
  }
  func.func @transform_2(%arg0: i32) -> (i32, i32) {
    %c0_i32 = arith.constant 0 : i32
    %c0_i32_0 = arith.constant 0 : i32
    %c0_i32_1 = arith.constant 0 : i32
    return %c0_i32, %c0_i32_0 : i32, i32
  }
  func.func @transform_3(%arg0: i32) -> (i32, i32) {
    %c0_i32 = arith.constant 0 : i32
    %c0_i32_0 = arith.constant 0 : i32
    %c0_i32_1 = arith.constant 0 : i32
    return %c0_i32, %c0_i32_0 : i32, i32
  }
  func.func @transform_4(%arg0: i32) -> (i32, i32) {
    %c0_i32 = arith.constant 0 : i32
    %c0_i32_0 = arith.constant 0 : i32
    %c0_i32_1 = arith.constant 0 : i32
    return %c0_i32, %c0_i32_0 : i32, i32
  }
  func.func @transform_5(%arg0: i32) -> (i32, i32) {
    %c0_i32 = arith.constant 0 : i32
    %c0_i32_0 = arith.constant 0 : i32
    return %arg0, %c0_i32 : i32, i32
  }
}

</mosaic_0001>

<llo_original>
// kernel: tpu_custom_call.1
$region0: #{tpu_custom_call.1}
  #allocation0 [shape = 'u32[]', space=smem, size = 0x4, offset = 0x4, fixed_abs, tag = 'smem constant byte address 0x4 - core index']
  #allocation1 [shape = 'u32[144,128]{1,0:T(1,128)}', space=vmem, size = 0x12000, scoped, tag = 'internal scratch']
  %s0 = inlined_call_operand.hbm [shape: f32[8,128], index: 0, kind: input, shape index: {}]
  %s1 = inlined_call_operand.hbm [shape: bf16[128,128], index: 1, kind: input, shape index: {}]
  %s2 = inlined_call_operand.vmem [shape: f32[1,128], index: 2, kind: input, shape index: {}]
  %s3 = inlined_call_operand.hbm [shape: bf16[128,128], index: 3, kind: input, shape index: {}]
  %s4 = inlined_call_operand.vmem [shape: f32[1,128], index: 4, kind: input, shape index: {}]
  %s5 = inlined_call_operand.hbm [shape: f32[8,128], index: 5, kind: output, shape index: {}]
  %s6 = sld [smem:[#allocation0]]
  $region42: #{tpu_custom_call.1} parent=0
    _
  %s8 = ssub.s32 1, %s6
  %s9 = scalar_select 0, %s8, %s6
  $region1: #{tpu_custom_call.1} parent=0
    #allocation2 [shape = 'u8[4096]{0}', space=vmem, size = 0x1000, scoped, tag = 'input window, operand 0, single buffered']
    #allocation3 [shape = 's32[1]{0}', space=sflag, size = 0x4, scoped, tag = 'scoped memory for tpu_custom_call.1']
    #allocation4 [shape = 's32[1]{0}', space=sflag, size = 0x4, scoped, tag = 'scoped memory for tpu_custom_call.1']
    #allocation5 [shape = 'u8[32768]{0}', space=vmem, size = 0x8000, scoped, tag = 'input window, operand 1, single buffered']
    #allocation6 [shape = 's32[1]{0}', space=sflag, size = 0x4, scoped, tag = 'scoped memory for tpu_custom_call.1']
    #allocation7 [shape = 'u8[32768]{0}', space=vmem, size = 0x8000, scoped, tag = 'input window, operand 3, single buffered']
    #allocation8 [shape = 'u8[4096]{0}', space=vmem, size = 0x1000, scoped, tag = 'output window, operand 0, single buffered']
    %10 = vsyncpa [#allocation3], 0
    %11 = vsyncpa [#allocation6], 0
    %12 = vsyncpa [#allocation4], 0
    // Predicated region
    $region2: #{tpu_custom_call.1} parent=1 // pred_check
      _
    $region3: #{tpu_custom_call.1} parent=1 // pred_check_branch
      %14 = sbr.rel (0) target = $region5
    $region4: #{tpu_custom_call.1} parent=1 // pred_region
      %s16 = ssub.s32 128, 128
      %17 = vsyncadd [#allocation3], %s16
      %s19 = sshll.u32 [#allocation2], 4
      %s20 = int_to_ptr.vmem [resolvable:$true] %s19
      %22 = dma.hbm_to_vmem [thread:$0]  %s0, 128, %s20, [#allocation3]
    $region5: #{tpu_custom_call.1} parent=1 // pred_fallthru
      _
    // Predicated region
    $region6: #{tpu_custom_call.1} parent=1 // pred_check
      _
    $region7: #{tpu_custom_call.1} parent=1 // pred_check_branch
      %24 = sbr.rel (0) target = $region9
    $region8: #{tpu_custom_call.1} parent=1 // pred_region
      %s26 = ssub.s32 1024, 1024
      %27 = vsyncadd [#allocation6], %s26
      %s28 = sshll.u32 [#allocation5], 4
      %s29 = int_to_ptr.vmem [resolvable:$true] %s28
      %34 = dma.hbm_to_vmem [thread:$0]  %s1, 1024, %s29, [#allocation6], 64, 64, 4
    $region9: #{tpu_custom_call.1} parent=1 // pred_fallthru
      _
    // Predicated region
    $region10: #{tpu_custom_call.1} parent=1 // pred_check
      _
    $region11: #{tpu_custom_call.1} parent=1 // pred_check_branch
      %36 = sbr.rel (0) target = $region13
    $region12: #{tpu_custom_call.1} parent=1 // pred_region
      _
    $region13: #{tpu_custom_call.1} parent=1 // pred_fallthru
      _
    // Predicated region
    $region14: #{tpu_custom_call.1} parent=1 // pred_check
      _
    $region15: #{tpu_custom_call.1} parent=1 // pred_check_branch
      %38 = sbr.rel (0) target = $region17
    $region16: #{tpu_custom_call.1} parent=1 // pred_region
      %s40 = ssub.s32 1024, 1024
      %41 = vsyncadd [#allocation6], %s40
      %s42 = sshll.u32 [#allocation7], 4
      %s43 = int_to_ptr.vmem [resolvable:$true] %s42
      %48 = dma.hbm_to_vmem [thread:$0]  %s3, 1024, %s43, [#allocation6], 64, 64, 4
    $region17: #{tpu_custom_call.1} parent=1 // pred_fallthru
      _
    // Predicated region
    $region18: #{tpu_custom_call.1} parent=1 // pred_check
      _
    $region19: #{tpu_custom_call.1} parent=1 // pred_check_branch
      %50 = sbr.rel (0) target = $region21
    $region20: #{tpu_custom_call.1} parent=1 // pred_region
      _
    $region21: #{tpu_custom_call.1} parent=1 // pred_fallthru
      _
    // Predicated region
    $region22: #{tpu_custom_call.1} parent=1 // pred_check
      _
    $region23: #{tpu_custom_call.1} parent=1 // pred_check_branch
      %52 = sbr.rel (0) target = $region25
    $region24: #{tpu_custom_call.1} parent=1 // pred_region
      %53 = dma.done [#allocation3], 128
    $region25: #{tpu_custom_call.1} parent=1 // pred_fallthru
      _
    // Predicated region
    $region26: #{tpu_custom_call.1} parent=1 // pred_check
      _
    $region27: #{tpu_custom_call.1} parent=1 // pred_check_branch
      %55 = sbr.rel (0) target = $region29
    $region28: #{tpu_custom_call.1} parent=1 // pred_region
      %56 = dma.done [#allocation6], 1024
    $region29: #{tpu_custom_call.1} parent=1 // pred_fallthru
      _
    // Predicated region
    $region30: #{tpu_custom_call.1} parent=1 // pred_check
      _
    $region31: #{tpu_custom_call.1} parent=1 // pred_check_branch
      %58 = sbr.rel (0) target = $region33
    $region32: #{tpu_custom_call.1} parent=1 // pred_region
      %59 = dma.done [#allocation6], 1024
    $region33: #{tpu_custom_call.1} parent=1 // pred_fallthru
      _
    %v61 = vld [vmem:[#allocation2] sm:$0xff]
    %v62 = vpack.c.bf16 %v61, %v61
    %v63 = vld [vmem:[#allocation5] sm:$0xf]
    %v64 = vld [vmem:[#allocation5 + $0x4] sm:$0xf]
    %v65 = vld [vmem:[#allocation5 + $0x8] sm:$0xf]
    %v66 = vld [vmem:[#allocation5 + $0xc] sm:$0xf]
    %v67 = vld [vmem:[#allocation5 + $0x10] sm:$0xf]
    %v68 = vld [vmem:[#allocation5 + $0x14] sm:$0xf]
    %v69 = vld [vmem:[#allocation5 + $0x18] sm:$0xf]
    %v70 = vld [vmem:[#allocation5 + $0x1c] sm:$0xf]
    %v71 = vld [vmem:[#allocation5 + $0x20] sm:$0xf]
    %v72 = vld [vmem:[#allocation5 + $0x24] sm:$0xf]
    %v73 = vld [vmem:[#allocation5 + $0x28] sm:$0xf]
    %v74 = vld [vmem:[#allocation5 + $0x2c] sm:$0xf]
    %v75 = vld [vmem:[#allocation5 + $0x30] sm:$0xf]
    %v76 = vld [vmem:[#allocation5 + $0x34] sm:$0xf]
    %v77 = vld [vmem:[#allocation5 + $0x38] sm:$0xf]
    %v78 = vld [vmem:[#allocation5 + $0x3c] sm:$0xf]
    %v79 = vld [vmem:[%s2] sm:$0x1]
    %v81 = vlaneseq
    %v82 = vshrl.u32 %v81, 7
    %v83 = vsub.s32 0, %v82
    %v84 = vrot.slane %v79, %v83
    %v102 = vunpack.c.l.b16 %v63
    %v103 = vunpack.c.l.b16 %v64
    %v104 = vunpack.c.l.b16 %v65
    %v105 = vunpack.c.l.b16 %v66
    %v106 = vunpack.c.l.b16 %v67
    %v107 = vunpack.c.l.b16 %v68
    %v108 = vunpack.c.l.b16 %v69
    %v109 = vunpack.c.l.b16 %v70
    %v110 = vunpack.c.l.b16 %v71
    %v111 = vunpack.c.l.b16 %v72
    %v112 = vunpack.c.l.b16 %v73
    %v113 = vunpack.c.l.b16 %v74
    %v114 = vunpack.c.l.b16 %v75
    %v115 = vunpack.c.l.b16 %v76
    %v116 = vunpack.c.l.b16 %v77
    %v117 = vunpack.c.l.b16 %v78
    %v118 = vpack.c.b16 %v103, %v102
    %v119 = vpack.c.b16 %v105, %v104
    %v120 = vpack.c.b16 %v107, %v106
    %v121 = vpack.c.b16 %v109, %v108
    %v122 = vpack.c.b16 %v111, %v110
    %v123 = vpack.c.b16 %v113, %v112
    %v124 = vpack.c.b16 %v115, %v114
    %v125 = vpack.c.b16 %v117, %v116
    %134 = vmatprep.subr.bf16.mxu0 0
    %135 = vmatpush1.bf16.msra.mxu0 %v125
    %136 = vmatprep.subr.bf16.mxu0 0
    %137 = vmatpush1.bf16.msra.mxu0 %v124
    %138 = vmatprep.subr.bf16.mxu0 0
    %139 = vmatpush1.bf16.msra.mxu0 %v123
    %140 = vmatprep.subr.bf16.mxu0 0
    %141 = vmatpush1.bf16.msra.mxu0 %v122
    %142 = vmatprep.subr.bf16.mxu0 0
    %143 = vmatpush1.bf16.msra.mxu0 %v121
    %144 = vmatprep.subr.bf16.mxu0 0
    %145 = vmatpush1.bf16.msra.mxu0 %v120
    %146 = vmatprep.subr.bf16.mxu0 0
    %147 = vmatpush1.bf16.msra.mxu0 %v119
    %148 = vmatprep.subr.bf16.mxu0 0
    %149 = vmatpush1.bf16.msra.mxu0 %v118
    %150 = vmatprep.subr.bf16.mxu0 0
    %151 = vmatpush2.bf16.msra.mxu0 0
    %152 = vmatprep.subr.bf16.mxu0 0
    %153 = vmatpush2.bf16.msra.mxu0 0
    %154 = vmatprep.subr.bf16.mxu0 0
    %155 = vmatpush2.bf16.msra.mxu0 0
    %156 = vmatprep.subr.bf16.mxu0 0
    %157 = vmatpush2.bf16.msra.mxu0 0
    %158 = vmatprep.subr.bf16.mxu0 0
    %159 = vmatpush2.bf16.msra.mxu0 0
    %160 = vmatprep.subr.bf16.mxu0 0
    %161 = vmatpush2.bf16.msra.mxu0 0
    %162 = vmatprep.subr.bf16.mxu0 0
    %163 = vmatpush2.bf16.msra.mxu0 0
    %164 = vmatprep.subr.bf16.mxu0 0
    %165 = vmatpush2.bf16.msra.mxu0 0
    %166 = vmatprep.mubr.bf16.mxu0 0
    %167 = vmatmul.mubr.bf16.gmra.mxu0 %v62
    %v168 = vpop.f32.mrf.mxu0
    %v169 = vadd.f32 %v84, %v168
    %v170 = vpop.f32.mrf.mxu0
    %v171 = vpop.f32.mrf.mxu0
    %v172 = vpop.f32.mrf.mxu0
    %173 = vdwg.mxu0
    %v174 = vmax.f32 %v169, 0.0
    %v175 = vpack.c.bf16 %v174, %v174
    %v176 = vld [vmem:[#allocation7] sm:$0xf]
    %v177 = vld [vmem:[#allocation7 + $0x4] sm:$0xf]
    %v178 = vld [vmem:[#allocation7 + $0x8] sm:$0xf]
    %v179 = vld [vmem:[#allocation7 + $0xc] sm:$0xf]
    %v180 = vld [vmem:[#allocation7 + $0x10] sm:$0xf]
    %v181 = vld [vmem:[#allocation7 + $0x14] sm:$0xf]
    %v182 = vld [vmem:[#allocation7 + $0x18] sm:$0xf]
    %v183 = vld [vmem:[#allocation7 + $0x1c] sm:$0xf]
    %v184 = vld [vmem:[#allocation7 + $0x20] sm:$0xf]
    %v185 = vld [vmem:[#allocation7 + $0x24] sm:$0xf]
    %v186 = vld [vmem:[#allocation7 + $0x28] sm:$0xf]
    %v187 = vld [vmem:[#allocation7 + $0x2c] sm:$0xf]
    %v188 = vld [vmem:[#allocation7 + $0x30] sm:$0xf]
    %v189 = vld [vmem:[#allocation7 + $0x34] sm:$0xf]
    %v190 = vld [vmem:[#allocation7 + $0x38] sm:$0xf]
    %v191 = vld [vmem:[#allocation7 + $0x3c] sm:$0xf]
    %v192 = vld [vmem:[%s4] sm:$0x1]
    %v194 = vlaneseq
    %v195 = vshrl.u32 %v194, 7
    %v196 = vsub.s32 0, %v195
    %v197 = vrot.slane %v192, %v196
    %v215 = vunpack.c.l.b16 %v176
    %v216 = vunpack.c.l.b16 %v177
    %v217 = vunpack.c.l.b16 %v178
    %v218 = vunpack.c.l.b16 %v179
    %v219 = vunpack.c.l.b16 %v180
    %v220 = vunpack.c.l.b16 %v181
    %v221 = vunpack.c.l.b16 %v182
    %v222 = vunpack.c.l.b16 %v183
    %v223 = vunpack.c.l.b16 %v184
    %v224 = vunpack.c.l.b16 %v185
    %v225 = vunpack.c.l.b16 %v186
    %v226 = vunpack.c.l.b16 %v187
    %v227 = vunpack.c.l.b16 %v188
    %v228 = vunpack.c.l.b16 %v189
    %v229 = vunpack.c.l.b16 %v190
    %v230 = vunpack.c.l.b16 %v191
    %v231 = vpack.c.b16 %v216, %v215
    %v232 = vpack.c.b16 %v218, %v217
    %v233 = vpack.c.b16 %v220, %v219
    %v234 = vpack.c.b16 %v222, %v221
    %v235 = vpack.c.b16 %v224, %v223
    %v236 = vpack.c.b16 %v226, %v225
    %v237 = vpack.c.b16 %v228, %v227
    %v238 = vpack.c.b16 %v230, %v229
    %247 = vmatprep.subr.bf16.mxu0 0
    %248 = vmatpush1.bf16.msra.mxu0 %v238
    %249 = vmatprep.subr.bf16.mxu0 0
    %250 = vmatpush1.bf16.msra.mxu0 %v237
    %251 = vmatprep.subr.bf16.mxu0 0
    %252 = vmatpush1.bf16.msra.mxu0 %v236
    %253 = vmatprep.subr.bf16.mxu0 0
    %254 = vmatpush1.bf16.msra.mxu0 %v235
    %255 = vmatprep.subr.bf16.mxu0 0
    %256 = vmatpush1.bf16.msra.mxu0 %v234
    %257 = vmatprep.subr.bf16.mxu0 0
    %258 = vmatpush1.bf16.msra.mxu0 %v233
    %259 = vmatprep.subr.bf16.mxu0 0
    %260 = vmatpush1.bf16.msra.mxu0 %v232
    %261 = vmatprep.subr.bf16.mxu0 0
    %262 = vmatpush1.bf16.msra.mxu0 %v231
    %263 = vmatprep.subr.bf16.mxu0 0
    %264 = vmatpush2.bf16.msra.mxu0 0
    %265 = vmatprep.subr.bf16.mxu0 0
    %266 = vmatpush2.bf16.msra.mxu0 0
    %267 = vmatprep.subr.bf16.mxu0 0
    %268 = vmatpush2.bf16.msra.mxu0 0
    %269 = vmatprep.subr.bf16.mxu0 0
    %270 = vmatpush2.bf16.msra.mxu0 0
    %271 = vmatprep.subr.bf16.mxu0 0
    %272 = vmatpush2.bf16.msra.mxu0 0
    %273 = vmatprep.subr.bf16.mxu0 0
    %274 = vmatpush2.bf16.msra.mxu0 0
    %275 = vmatprep.subr.bf16.mxu0 0
    %276 = vmatpush2.bf16.msra.mxu0 0
    %277 = vmatprep.subr.bf16.mxu0 0
    %278 = vmatpush2.bf16.msra.mxu0 0
    %279 = vmatprep.mubr.bf16.mxu0 0
    %280 = vmatmul.mubr.bf16.gmra.mxu0 %v175
    %v281 = vpop.f32.mrf.mxu0
    %v282 = vadd.f32 %v197, %v281
    %v283 = vpop.f32.mrf.mxu0
    %v284 = vpop.f32.mrf.mxu0
    %v285 = vpop.f32.mrf.mxu0
    %286 = vdwg.mxu0
    %287 = vst [vmem:[#allocation8] sm:$0xff] %v282
    // Predicated region
    $region34: #{tpu_custom_call.1} parent=1 // pred_check
      _
    $region35: #{tpu_custom_call.1} parent=1 // pred_check_branch
      %289 = sbr.rel (0) target = $region37
    $region36: #{tpu_custom_call.1} parent=1 // pred_region
      %s291 = ssub.s32 128, 128
      %292 = vsyncadd [#allocation4], %s291
      %s294 = sshll.u32 [#allocation8], 4
      %s295 = int_to_ptr.vmem [resolvable:$true] %s294
      %297 = dma.vmem_to_hbm [thread:$0]  %s295, 128, %s5, [#allocation4]
    $region37: #{tpu_custom_call.1} parent=1 // pred_fallthru
      _
    // Predicated region
    $region38: #{tpu_custom_call.1} parent=1 // pred_check
      _
    $region39: #{tpu_custom_call.1} parent=1 // pred_check_branch
      %299 = sbr.rel (0) target = $region41
    $region40: #{tpu_custom_call.1} parent=1 // pred_region
      %300 = dma.done [#allocation4], 128
    $region41: #{tpu_custom_call.1} parent=1 // pred_fallthru
      _
    %301 = vsyncpa [#allocation3], 1
    %302 = vsyncpa [#allocation6], 1
    %303 = vsyncpa [#allocation4], 1

</llo_original>
